<compile_context>
chip_gen: v5e
topology: v5e:2x2
jax: 0.10.0
libtpu: 0.0.40
codegen_flags: <defaults>
</compile_context>

<pallas_src>
import jax
import jax.numpy as jnp
from jax.experimental import pallas as pl
from jax.experimental.pallas import tpu as pltpu

# ---------------- config (mirrors `conf` in the original module) ----------------
NUM_USERS = 12
NUM_ITEMS = 12
ATT_DIM = 32
ASPECT_DIM = 16
HIDDEN_DIM = 32
WORD_DIM = 32     # GRU / dropout are created in __init__ but unused in forward
BATCH = 8

EMB_COLS = ATT_DIM + ASPECT_DIM           # 48  : [gamma | beta] per table row
PACK_K = 2 * ATT_DIM + 2 * ASPECT_DIM     # 96  : packed contraction dim
W_ROWS = PACK_K + 2 * BATCH               # 112 : weights (96) + bias slab (2B)


# ----------------------------- Pallas kernel ------------------------------------
def encoder_kernel(user_ref, item_ref, emb_ref, w_ref,
                   gu_ref, gi_ref, bu_ref, bi_ref, h_ref):
    B = gu_ref.shape[0]

    gu_rows, gi_rows, bu_rows, bi_rows, xu_rows, xv_rows = ([] for _ in range(6))
    for b in range(B):                       # static unroll, B = 8
        u = user_ref[b]                      # scalar int32 from SMEM
        it = item_ref[b]
        urow = emb_ref[u]                    # (1, 48) = [gamma_u | beta_u]
        irow = emb_ref[NUM_USERS + it]       # (1, 48) = [gamma_i | beta_i]
        gu = urow[:, :ATT_DIM]
        bu = urow[:, ATT_DIM:]
        gi = irow[:, :ATT_DIM]
        bi = irow[:, ATT_DIM:]
        gu_rows.append(gu)
        gi_rows.append(gi)
        bu_rows.append(bu)
        bi_rows.append(bi)
        xu_rows.append(jnp.concatenate([gu, gi], axis=1))   # (1, 64)
        xv_rows.append(jnp.concatenate([bu, bi], axis=1))   # (1, 32)

    gamma_u = jnp.concatenate(gu_rows, axis=0)               # (B, 32)
    gamma_i = jnp.concatenate(gi_rows, axis=0)               # (B, 32)
    beta_u = jnp.concatenate(bu_rows, axis=0)                # (B, 16)
    beta_i = jnp.concatenate(bi_rows, axis=0)                # (B, 16)

    gu_ref[...] = gamma_u
    gi_ref[...] = gamma_i
    bu_ref[...] = beta_u
    bi_ref[...] = beta_i

    # Packed activation (2B, 96):
    #   rows 0:B  = [gamma_u | gamma_i | 0_32]   -> hits W3^T (rows 0:64 of w)
    #   rows B:2B = [0_64    | beta_u  | beta_i] -> hits W4^T (rows 64:96 of w)
    x_u = jnp.concatenate(xu_rows, axis=0)                    # (B, 64)
    x_v = jnp.concatenate(xv_rows, axis=0)                    # (B, 32)
    x = jnp.concatenate(
        [jnp.concatenate([x_u, jnp.zeros((B, 2 * ASPECT_DIM), jnp.float32)], axis=1),
         jnp.concatenate([jnp.zeros((B, 2 * ATT_DIM), jnp.float32), x_v], axis=1)],
        axis=0)                                               # (2B, 96)

    # One dense matmul covering both Linear layers; bias lives in the same slab.
    y = jnp.dot(x, w_ref[0:PACK_K, :], preferred_element_type=jnp.float32)  # (2B, 32)
    t = jnp.tanh(y + w_ref[PACK_K:PACK_K + 2 * B, :])                       # (2B, 32)

    # u + v : sublane-aligned split at row B (= 8, the f32 vreg boundary)
    h_ref[...] = (t[:B, :] + t[B:, :])[None].astype(h_ref.dtype)            # (1, B, 32)


# ------------------------------- forward wrapper --------------------------------
@jax.jit
def encoder_forward(user, item, params):
    """Returns (gamma_u, gamma_i, beta_u, beta_i, hidden_state)."""
    B = user.shape[0]
    assert B == BATCH, "packed bias slab is sized for BATCH rows"

    emb_slab = params["emb_slab"]            # (NU+NI, 1, 48)
    w_slab = params["w_slab"]                # (112, 32)

    full = lambda shape: pl.BlockSpec(shape, lambda: (0,) * len(shape))
    smem = lambda: pl.BlockSpec(memory_space=pltpu.MemorySpace.SMEM)

    gamma_u, gamma_i, beta_u, beta_i, hidden_state = pl.pallas_call(
        encoder_kernel,
        out_shape=(
            jax.ShapeDtypeStruct((B, ATT_DIM), jnp.float32),      # gamma_u
            jax.ShapeDtypeStruct((B, ATT_DIM), jnp.float32),      # gamma_i
            jax.ShapeDtypeStruct((B, ASPECT_DIM), jnp.float32),   # beta_u
            jax.ShapeDtypeStruct((B, ASPECT_DIM), jnp.float32),   # beta_i
            jax.ShapeDtypeStruct((1, B, HIDDEN_DIM), jnp.float32),  # hidden_state
        ),
        in_specs=[smem(), smem(), full(emb_slab.shape), full(w_slab.shape)],
        out_specs=(
            full((B, ATT_DIM)),
            full((B, ATT_DIM)),
            full((B, ASPECT_DIM)),
            full((B, ASPECT_DIM)),
            full((1, B, HIDDEN_DIM)),
        ),
    )(user, item, emb_slab, w_slab)

    return gamma_u, gamma_i, beta_u, beta_i, hidden_state


# ------------------------- deterministic parameter init -------------------------
def xavier_normal(key, shape):
    fan_out, fan_in = shape[0], shape[1]
    std = jnp.sqrt(2.0 / (fan_in + fan_out))
    return std * jax.random.normal(key, shape, dtype=jnp.float32)


def pack_params(gamma_user, gamma_item, beta_user, beta_item, w3, b3, w4, b4):
    """Pre-pack embedding tables and weights/bias once at init time.

    emb_slab: (NU+NI, 1, 48) rows = [gamma | beta]; users first, items after.
    w_slab  : (112, 32) = rows 0:64  -> W3^T, rows 64:96 -> W4^T,
                          rows 96:104 -> b3 (x BATCH), rows 104:112 -> b4 (x BATCH).
    """
    emb_user = jnp.concatenate([gamma_user, beta_user], axis=1)    # (NU, 48)
    emb_item = jnp.concatenate([gamma_item, beta_item], axis=1)    # (NI, 48)
    emb_slab = jnp.concatenate([emb_user, emb_item], axis=0)       # (NU+NI, 48)
    emb_slab = emb_slab.reshape(NUM_USERS + NUM_ITEMS, 1, EMB_COLS)

    w_slab = jnp.zeros((W_ROWS, HIDDEN_DIM), jnp.float32)
    w_slab = w_slab.at[0:2 * ATT_DIM, :].set(w3.T)                 # (64, 32)
    w_slab = w_slab.at[2 * ATT_DIM:PACK_K, :].set(w4.T)            # (32, 32)
    w_slab = w_slab.at[PACK_K:PACK_K + BATCH, :].set(
        jnp.broadcast_to(b3, (BATCH, HIDDEN_DIM)))
    w_slab = w_slab.at[PACK_K + BATCH:, :].set(
        jnp.broadcast_to(b4, (BATCH, HIDDEN_DIM)))
    return emb_slab, w_slab


def init_params(key):
    ks = jax.random.split(key, 8)
    gamma_user = xavier_normal(ks[0], (NUM_USERS, ATT_DIM))
    gamma_item = xavier_normal(ks[1], (NUM_ITEMS, ATT_DIM))
    beta_user = xavier_normal(ks[2], (NUM_USERS, ASPECT_DIM))
    beta_item = xavier_normal(ks[3], (NUM_ITEMS, ASPECT_DIM))
    w3 = xavier_normal(ks[4], (HIDDEN_DIM, 2 * ATT_DIM))
    b3 = jnp.zeros((HIDDEN_DIM,), jnp.float32)
    w4 = xavier_normal(ks[5], (HIDDEN_DIM, 2 * ASPECT_DIM))
    b4 = jnp.zeros((HIDDEN_DIM,), jnp.float32)

    emb_slab, w_slab = pack_params(gamma_user, gamma_item, beta_user, beta_item,
                                   w3, b3, w4, b4)
    return {
        # raw tables/weights kept only for the reference check
        "gamma_user_embedding": gamma_user,
        "gamma_item_embedding": gamma_item,
        "beta_user_embedding": beta_user,
        "beta_item_embedding": beta_item,
        "linear_eq_3_w": w3, "linear_eq_3_b": b3,
        "linear_eq_4_w": w4, "linear_eq_4_b": b4,
        # pre-packed slabs used by the kernel
        "emb_slab": emb_slab,
        "w_slab": w_slab,
        # TODO(synk): nn.GRU / nn.Dropout are constructed in __init__ but never
        # used in forward, so they are intentionally not implemented here.
    }


# ------------------------------------ main ---------------------------------------
if __name__ == "__main__":
    key = jax.random.PRNGKey(0)
    pkey, ukey, ikey = jax.random.split(key, 3)
    params = init_params(pkey)

    user = jax.random.randint(ukey, (BATCH,), 0, NUM_USERS, dtype=jnp.int32)
    item = jax.random.randint(ikey, (BATCH,), 0, NUM_ITEMS, dtype=jnp.int32)

    gamma_u, gamma_i, beta_u, beta_i, hidden_state = encoder_forward(user, item, params)
    jax.block_until_ready(hidden_state)

    # reference check in plain JAX (original un-packed formulation)
    gu = params["gamma_user_embedding"][user]
    gi = params["gamma_item_embedding"][item]
    bu = params["beta_user_embedding"][user]
    bi = params["beta_item_embedding"][item]
    u_ref = jnp.tanh(jnp.concatenate([gu, gi], 1) @ params["linear_eq_3_w"].T
                     + params["linear_eq_3_b"])
    v_ref = jnp.tanh(jnp.concatenate([bu, bi], 1) @ params["linear_eq_4_w"].T
                     + params["linear_eq_4_b"])
    href = (u_ref + v_ref).reshape(1, BATCH, HIDDEN_DIM)

    assert jnp.allclose(gamma_u, gu) and jnp.allclose(gamma_i, gi)
    assert jnp.allclose(beta_u, bu) and jnp.allclose(beta_i, bi)
    assert jnp.allclose(hidden_state, href, atol=1e-5), "mismatch vs reference"
    assert hidden_state.shape == (1, BATCH, HIDDEN_DIM)

    print("KERNEL_OK")
</pallas_src>

<mosaic_0001>
module attributes {stable_mosaic.version = 11 : i64} {
  func.func @encoder_kernel(%arg0: memref<8xi32, #tpu.memory_space<smem>>, %arg1: memref<8xi32, #tpu.memory_space<smem>>, %arg2: memref<24x1x48xf32, #tpu.memory_space<vmem>>, %arg3: memref<112x32xf32, #tpu.memory_space<vmem>>, %arg4: memref<8x32xf32, #tpu.memory_space<vmem>>, %arg5: memref<8x32xf32, #tpu.memory_space<vmem>>, %arg6: memref<8x16xf32, #tpu.memory_space<vmem>>, %arg7: memref<8x16xf32, #tpu.memory_space<vmem>>, %arg8: memref<1x8x32xf32, #tpu.memory_space<vmem>>) attributes {dimension_semantics = [], scalar_prefetch = 0 : i64, scratch_operands = 0 : i64, tpu.core_type = #tpu.core_type<tc>} {
    %c0 = arith.constant 0 : index
    %0 = memref.load %arg0[%c0] : memref<8xi32, #tpu.memory_space<smem>>
    %c0_0 = arith.constant 0 : index
    %1 = memref.load %arg1[%c0_0] : memref<8xi32, #tpu.memory_space<smem>>
    %2 = arith.index_cast %0 : i32 to index
    %c0_1 = arith.constant 0 : index
    %c0_2 = arith.constant 0 : index
    %3 = vector.load %arg2[%2, %c0_1, %c0_2] : memref<24x1x48xf32, #tpu.memory_space<vmem>>, vector<1x1x48xf32>
    %4 = vector.shape_cast %3 : vector<1x1x48xf32> to vector<1x48xf32>
    %c12_i32 = arith.constant 12 : i32
    %5 = arith.addi %c12_i32, %1 : i32
    %6 = arith.index_cast %5 : i32 to index
    %c0_3 = arith.constant 0 : index
    %c0_4 = arith.constant 0 : index
    %7 = vector.load %arg2[%6, %c0_3, %c0_4] : memref<24x1x48xf32, #tpu.memory_space<vmem>>, vector<1x1x48xf32>
    %8 = vector.shape_cast %7 : vector<1x1x48xf32> to vector<1x48xf32>
    %9 = vector.extract_strided_slice %4 {offsets = [0, 0], sizes = [1, 32], strides = [1, 1]} : vector<1x48xf32> to vector<1x32xf32>
    %10 = vector.extract_strided_slice %4 {offsets = [0, 32], sizes = [1, 16], strides = [1, 1]} : vector<1x48xf32> to vector<1x16xf32>
    %11 = vector.extract_strided_slice %8 {offsets = [0, 0], sizes = [1, 32], strides = [1, 1]} : vector<1x48xf32> to vector<1x32xf32>
    %12 = vector.extract_strided_slice %8 {offsets = [0, 32], sizes = [1, 16], strides = [1, 1]} : vector<1x48xf32> to vector<1x16xf32>
    %13 = tpu.concatenate %9, %11 in 1 : vector<1x32xf32>, vector<1x32xf32> -> vector<1x64xf32>
    %14 = tpu.concatenate %10, %12 in 1 : vector<1x16xf32>, vector<1x16xf32> -> vector<1x32xf32>
    %c1 = arith.constant 1 : index
    %15 = memref.load %arg0[%c1] : memref<8xi32, #tpu.memory_space<smem>>
    %c1_5 = arith.constant 1 : index
    %16 = memref.load %arg1[%c1_5] : memref<8xi32, #tpu.memory_space<smem>>
    %17 = arith.index_cast %15 : i32 to index
    %c0_6 = arith.constant 0 : index
    %c0_7 = arith.constant 0 : index
    %18 = vector.load %arg2[%17, %c0_6, %c0_7] : memref<24x1x48xf32, #tpu.memory_space<vmem>>, vector<1x1x48xf32>
    %19 = vector.shape_cast %18 : vector<1x1x48xf32> to vector<1x48xf32>
    %c12_i32_8 = arith.constant 12 : i32
    %20 = arith.addi %c12_i32_8, %16 : i32
    %21 = arith.index_cast %20 : i32 to index
    %c0_9 = arith.constant 0 : index
    %c0_10 = arith.constant 0 : index
    %22 = vector.load %arg2[%21, %c0_9, %c0_10] : memref<24x1x48xf32, #tpu.memory_space<vmem>>, vector<1x1x48xf32>
    %23 = vector.shape_cast %22 : vector<1x1x48xf32> to vector<1x48xf32>
    %24 = vector.extract_strided_slice %19 {offsets = [0, 0], sizes = [1, 32], strides = [1, 1]} : vector<1x48xf32> to vector<1x32xf32>
    %25 = vector.extract_strided_slice %19 {offsets = [0, 32], sizes = [1, 16], strides = [1, 1]} : vector<1x48xf32> to vector<1x16xf32>
    %26 = vector.extract_strided_slice %23 {offsets = [0, 0], sizes = [1, 32], strides = [1, 1]} : vector<1x48xf32> to vector<1x32xf32>
    %27 = vector.extract_strided_slice %23 {offsets = [0, 32], sizes = [1, 16], strides = [1, 1]} : vector<1x48xf32> to vector<1x16xf32>
    %28 = tpu.concatenate %24, %26 in 1 : vector<1x32xf32>, vector<1x32xf32> -> vector<1x64xf32>
    %29 = tpu.concatenate %25, %27 in 1 : vector<1x16xf32>, vector<1x16xf32> -> vector<1x32xf32>
    %c2 = arith.constant 2 : index
    %30 = memref.load %arg0[%c2] : memref<8xi32, #tpu.memory_space<smem>>
    %c2_11 = arith.constant 2 : index
    %31 = memref.load %arg1[%c2_11] : memref<8xi32, #tpu.memory_space<smem>>
    %32 = arith.index_cast %30 : i32 to index
    %c0_12 = arith.constant 0 : index
    %c0_13 = arith.constant 0 : index
    %33 = vector.load %arg2[%32, %c0_12, %c0_13] : memref<24x1x48xf32, #tpu.memory_space<vmem>>, vector<1x1x48xf32>
    %34 = vector.shape_cast %33 : vector<1x1x48xf32> to vector<1x48xf32>
    %c12_i32_14 = arith.constant 12 : i32
    %35 = arith.addi %c12_i32_14, %31 : i32
    %36 = arith.index_cast %35 : i32 to index
    %c0_15 = arith.constant 0 : index
    %c0_16 = arith.constant 0 : index
    %37 = vector.load %arg2[%36, %c0_15, %c0_16] : memref<24x1x48xf32, #tpu.memory_space<vmem>>, vector<1x1x48xf32>
    %38 = vector.shape_cast %37 : vector<1x1x48xf32> to vector<1x48xf32>
    %39 = vector.extract_strided_slice %34 {offsets = [0, 0], sizes = [1, 32], strides = [1, 1]} : vector<1x48xf32> to vector<1x32xf32>
    %40 = vector.extract_strided_slice %34 {offsets = [0, 32], sizes = [1, 16], strides = [1, 1]} : vector<1x48xf32> to vector<1x16xf32>
    %41 = vector.extract_strided_slice %38 {offsets = [0, 0], sizes = [1, 32], strides = [1, 1]} : vector<1x48xf32> to vector<1x32xf32>
    %42 = vector.extract_strided_slice %38 {offsets = [0, 32], sizes = [1, 16], strides = [1, 1]} : vector<1x48xf32> to vector<1x16xf32>
    %43 = tpu.concatenate %39, %41 in 1 : vector<1x32xf32>, vector<1x32xf32> -> vector<1x64xf32>
    %44 = tpu.concatenate %40, %42 in 1 : vector<1x16xf32>, vector<1x16xf32> -> vector<1x32xf32>
    %c3 = arith.constant 3 : index
    %45 = memref.load %arg0[%c3] : memref<8xi32, #tpu.memory_space<smem>>
    %c3_17 = arith.constant 3 : index
    %46 = memref.load %arg1[%c3_17] : memref<8xi32, #tpu.memory_space<smem>>
    %47 = arith.index_cast %45 : i32 to index
    %c0_18 = arith.constant 0 : index
    %c0_19 = arith.constant 0 : index
    %48 = vector.load %arg2[%47, %c0_18, %c0_19] : memref<24x1x48xf32, #tpu.memory_space<vmem>>, vector<1x1x48xf32>
    %49 = vector.shape_cast %48 : vector<1x1x48xf32> to vector<1x48xf32>
    %c12_i32_20 = arith.constant 12 : i32
    %50 = arith.addi %c12_i32_20, %46 : i32
    %51 = arith.index_cast %50 : i32 to index
    %c0_21 = arith.constant 0 : index
    %c0_22 = arith.constant 0 : index
    %52 = vector.load %arg2[%51, %c0_21, %c0_22] : memref<24x1x48xf32, #tpu.memory_space<vmem>>, vector<1x1x48xf32>
    %53 = vector.shape_cast %52 : vector<1x1x48xf32> to vector<1x48xf32>
    %54 = vector.extract_strided_slice %49 {offsets = [0, 0], sizes = [1, 32], strides = [1, 1]} : vector<1x48xf32> to vector<1x32xf32>
    %55 = vector.extract_strided_slice %49 {offsets = [0, 32], sizes = [1, 16], strides = [1, 1]} : vector<1x48xf32> to vector<1x16xf32>
    %56 = vector.extract_strided_slice %53 {offsets = [0, 0], sizes = [1, 32], strides = [1, 1]} : vector<1x48xf32> to vector<1x32xf32>
    %57 = vector.extract_strided_slice %53 {offsets = [0, 32], sizes = [1, 16], strides = [1, 1]} : vector<1x48xf32> to vector<1x16xf32>
    %58 = tpu.concatenate %54, %56 in 1 : vector<1x32xf32>, vector<1x32xf32> -> vector<1x64xf32>
    %59 = tpu.concatenate %55, %57 in 1 : vector<1x16xf32>, vector<1x16xf32> -> vector<1x32xf32>
    %c4 = arith.constant 4 : index
    %60 = memref.load %arg0[%c4] : memref<8xi32, #tpu.memory_space<smem>>
    %c4_23 = arith.constant 4 : index
    %61 = memref.load %arg1[%c4_23] : memref<8xi32, #tpu.memory_space<smem>>
    %62 = arith.index_cast %60 : i32 to index
    %c0_24 = arith.constant 0 : index
    %c0_25 = arith.constant 0 : index
    %63 = vector.load %arg2[%62, %c0_24, %c0_25] : memref<24x1x48xf32, #tpu.memory_space<vmem>>, vector<1x1x48xf32>
    %64 = vector.shape_cast %63 : vector<1x1x48xf32> to vector<1x48xf32>
    %c12_i32_26 = arith.constant 12 : i32
    %65 = arith.addi %c12_i32_26, %61 : i32
    %66 = arith.index_cast %65 : i32 to index
    %c0_27 = arith.constant 0 : index
    %c0_28 = arith.constant 0 : index
    %67 = vector.load %arg2[%66, %c0_27, %c0_28] : memref<24x1x48xf32, #tpu.memory_space<vmem>>, vector<1x1x48xf32>
    %68 = vector.shape_cast %67 : vector<1x1x48xf32> to vector<1x48xf32>
    %69 = vector.extract_strided_slice %64 {offsets = [0, 0], sizes = [1, 32], strides = [1, 1]} : vector<1x48xf32> to vector<1x32xf32>
    %70 = vector.extract_strided_slice %64 {offsets = [0, 32], sizes = [1, 16], strides = [1, 1]} : vector<1x48xf32> to vector<1x16xf32>
    %71 = vector.extract_strided_slice %68 {offsets = [0, 0], sizes = [1, 32], strides = [1, 1]} : vector<1x48xf32> to vector<1x32xf32>
    %72 = vector.extract_strided_slice %68 {offsets = [0, 32], sizes = [1, 16], strides = [1, 1]} : vector<1x48xf32> to vector<1x16xf32>
    %73 = tpu.concatenate %69, %71 in 1 : vector<1x32xf32>, vector<1x32xf32> -> vector<1x64xf32>
    %74 = tpu.concatenate %70, %72 in 1 : vector<1x16xf32>, vector<1x16xf32> -> vector<1x32xf32>
    %c5 = arith.constant 5 : index
    %75 = memref.load %arg0[%c5] : memref<8xi32, #tpu.memory_space<smem>>
    %c5_29 = arith.constant 5 : index
    %76 = memref.load %arg1[%c5_29] : memref<8xi32, #tpu.memory_space<smem>>
    %77 = arith.index_cast %75 : i32 to index
    %c0_30 = arith.constant 0 : index
    %c0_31 = arith.constant 0 : index
    %78 = vector.load %arg2[%77, %c0_30, %c0_31] : memref<24x1x48xf32, #tpu.memory_space<vmem>>, vector<1x1x48xf32>
    %79 = vector.shape_cast %78 : vector<1x1x48xf32> to vector<1x48xf32>
    %c12_i32_32 = arith.constant 12 : i32
    %80 = arith.addi %c12_i32_32, %76 : i32
    %81 = arith.index_cast %80 : i32 to index
    %c0_33 = arith.constant 0 : index
    %c0_34 = arith.constant 0 : index
    %82 = vector.load %arg2[%81, %c0_33, %c0_34] : memref<24x1x48xf32, #tpu.memory_space<vmem>>, vector<1x1x48xf32>
    %83 = vector.shape_cast %82 : vector<1x1x48xf32> to vector<1x48xf32>
    %84 = vector.extract_strided_slice %79 {offsets = [0, 0], sizes = [1, 32], strides = [1, 1]} : vector<1x48xf32> to vector<1x32xf32>
    %85 = vector.extract_strided_slice %79 {offsets = [0, 32], sizes = [1, 16], strides = [1, 1]} : vector<1x48xf32> to vector<1x16xf32>
    %86 = vector.extract_strided_slice %83 {offsets = [0, 0], sizes = [1, 32], strides = [1, 1]} : vector<1x48xf32> to vector<1x32xf32>
    %87 = vector.extract_strided_slice %83 {offsets = [0, 32], sizes = [1, 16], strides = [1, 1]} : vector<1x48xf32> to vector<1x16xf32>
    %88 = tpu.concatenate %84, %86 in 1 : vector<1x32xf32>, vector<1x32xf32> -> vector<1x64xf32>
    %89 = tpu.concatenate %85, %87 in 1 : vector<1x16xf32>, vector<1x16xf32> -> vector<1x32xf32>
    %c6 = arith.constant 6 : index
    %90 = memref.load %arg0[%c6] : memref<8xi32, #tpu.memory_space<smem>>
    %c6_35 = arith.constant 6 : index
    %91 = memref.load %arg1[%c6_35] : memref<8xi32, #tpu.memory_space<smem>>
    %92 = arith.index_cast %90 : i32 to index
    %c0_36 = arith.constant 0 : index
    %c0_37 = arith.constant 0 : index
    %93 = vector.load %arg2[%92, %c0_36, %c0_37] : memref<24x1x48xf32, #tpu.memory_space<vmem>>, vector<1x1x48xf32>
    %94 = vector.shape_cast %93 : vector<1x1x48xf32> to vector<1x48xf32>
    %c12_i32_38 = arith.constant 12 : i32
    %95 = arith.addi %c12_i32_38, %91 : i32
    %96 = arith.index_cast %95 : i32 to index
    %c0_39 = arith.constant 0 : index
    %c0_40 = arith.constant 0 : index
    %97 = vector.load %arg2[%96, %c0_39, %c0_40] : memref<24x1x48xf32, #tpu.memory_space<vmem>>, vector<1x1x48xf32>
    %98 = vector.shape_cast %97 : vector<1x1x48xf32> to vector<1x48xf32>
    %99 = vector.extract_strided_slice %94 {offsets = [0, 0], sizes = [1, 32], strides = [1, 1]} : vector<1x48xf32> to vector<1x32xf32>
    %100 = vector.extract_strided_slice %94 {offsets = [0, 32], sizes = [1, 16], strides = [1, 1]} : vector<1x48xf32> to vector<1x16xf32>
    %101 = vector.extract_strided_slice %98 {offsets = [0, 0], sizes = [1, 32], strides = [1, 1]} : vector<1x48xf32> to vector<1x32xf32>
    %102 = vector.extract_strided_slice %98 {offsets = [0, 32], sizes = [1, 16], strides = [1, 1]} : vector<1x48xf32> to vector<1x16xf32>
    %103 = tpu.concatenate %99, %101 in 1 : vector<1x32xf32>, vector<1x32xf32> -> vector<1x64xf32>
    %104 = tpu.concatenate %100, %102 in 1 : vector<1x16xf32>, vector<1x16xf32> -> vector<1x32xf32>
    %c7 = arith.constant 7 : index
    %105 = memref.load %arg0[%c7] : memref<8xi32, #tpu.memory_space<smem>>
    %c7_41 = arith.constant 7 : index
    %106 = memref.load %arg1[%c7_41] : memref<8xi32, #tpu.memory_space<smem>>
    %107 = arith.index_cast %105 : i32 to index
    %c0_42 = arith.constant 0 : index
    %c0_43 = arith.constant 0 : index
    %108 = vector.load %arg2[%107, %c0_42, %c0_43] : memref<24x1x48xf32, #tpu.memory_space<vmem>>, vector<1x1x48xf32>
    %109 = vector.shape_cast %108 : vector<1x1x48xf32> to vector<1x48xf32>
    %c12_i32_44 = arith.constant 12 : i32
    %110 = arith.addi %c12_i32_44, %106 : i32
    %111 = arith.index_cast %110 : i32 to index
    %c0_45 = arith.constant 0 : index
    %c0_46 = arith.constant 0 : index
    %112 = vector.load %arg2[%111, %c0_45, %c0_46] : memref<24x1x48xf32, #tpu.memory_space<vmem>>, vector<1x1x48xf32>
    %113 = vector.shape_cast %112 : vector<1x1x48xf32> to vector<1x48xf32>
    %114 = vector.extract_strided_slice %109 {offsets = [0, 0], sizes = [1, 32], strides = [1, 1]} : vector<1x48xf32> to vector<1x32xf32>
    %115 = vector.extract_strided_slice %109 {offsets = [0, 32], sizes = [1, 16], strides = [1, 1]} : vector<1x48xf32> to vector<1x16xf32>
    %116 = vector.extract_strided_slice %113 {offsets = [0, 0], sizes = [1, 32], strides = [1, 1]} : vector<1x48xf32> to vector<1x32xf32>
    %117 = vector.extract_strided_slice %113 {offsets = [0, 32], sizes = [1, 16], strides = [1, 1]} : vector<1x48xf32> to vector<1x16xf32>
    %118 = tpu.concatenate %114, %116 in 1 : vector<1x32xf32>, vector<1x32xf32> -> vector<1x64xf32>
    %119 = tpu.concatenate %115, %117 in 1 : vector<1x16xf32>, vector<1x16xf32> -> vector<1x32xf32>
    %120 = tpu.concatenate %9, %24, %39, %54, %69, %84, %99, %114 in 0 : vector<1x32xf32>, vector<1x32xf32>, vector<1x32xf32>, vector<1x32xf32>, vector<1x32xf32>, vector<1x32xf32>, vector<1x32xf32>, vector<1x32xf32> -> vector<8x32xf32>
    %121 = tpu.concatenate %11, %26, %41, %56, %71, %86, %101, %116 in 0 : vector<1x32xf32>, vector<1x32xf32>, vector<1x32xf32>, vector<1x32xf32>, vector<1x32xf32>, vector<1x32xf32>, vector<1x32xf32>, vector<1x32xf32> -> vector<8x32xf32>
    %122 = tpu.concatenate %10, %25, %40, %55, %70, %85, %100, %115 in 0 : vector<1x16xf32>, vector<1x16xf32>, vector<1x16xf32>, vector<1x16xf32>, vector<1x16xf32>, vector<1x16xf32>, vector<1x16xf32>, vector<1x16xf32> -> vector<8x16xf32>
    %123 = tpu.concatenate %12, %27, %42, %57, %72, %87, %102, %117 in 0 : vector<1x16xf32>, vector<1x16xf32>, vector<1x16xf32>, vector<1x16xf32>, vector<1x16xf32>, vector<1x16xf32>, vector<1x16xf32>, vector<1x16xf32> -> vector<8x16xf32>
    %c0_47 = arith.constant 0 : index
    %c0_48 = arith.constant 0 : index
    %124 = vector.load %arg4[%c0_47, %c0_48] : memref<8x32xf32, #tpu.memory_space<vmem>>, vector<8x32xf32>
    tpu.vector_store %arg4[%c0_47, %c0_48], %120 {strides = array<i32>} : memref<8x32xf32, #tpu.memory_space<vmem>>, vector<8x32xf32>,
    %c0_49 = arith.constant 0 : index
    %c0_50 = arith.constant 0 : index
    %125 = vector.load %arg5[%c0_49, %c0_50] : memref<8x32xf32, #tpu.memory_space<vmem>>, vector<8x32xf32>
    tpu.vector_store %arg5[%c0_49, %c0_50], %121 {strides = array<i32>} : memref<8x32xf32, #tpu.memory_space<vmem>>, vector<8x32xf32>,
    %c0_51 = arith.constant 0 : index
    %c0_52 = arith.constant 0 : index
    %126 = vector.load %arg6[%c0_51, %c0_52] : memref<8x16xf32, #tpu.memory_space<vmem>>, vector<8x16xf32>
    tpu.vector_store %arg6[%c0_51, %c0_52], %122 {strides = array<i32>} : memref<8x16xf32, #tpu.memory_space<vmem>>, vector<8x16xf32>,
    %c0_53 = arith.constant 0 : index
    %c0_54 = arith.constant 0 : index
    %127 = vector.load %arg7[%c0_53, %c0_54] : memref<8x16xf32, #tpu.memory_space<vmem>>, vector<8x16xf32>
    tpu.vector_store %arg7[%c0_53, %c0_54], %123 {strides = array<i32>} : memref<8x16xf32, #tpu.memory_space<vmem>>, vector<8x16xf32>,
    %128 = tpu.concatenate %13, %28, %43, %58, %73, %88, %103, %118 in 0 : vector<1x64xf32>, vector<1x64xf32>, vector<1x64xf32>, vector<1x64xf32>, vector<1x64xf32>, vector<1x64xf32>, vector<1x64xf32>, vector<1x64xf32> -> vector<8x64xf32>
    %129 = tpu.concatenate %14, %29, %44, %59, %74, %89, %104, %119 in 0 : vector<1x32xf32>, vector<1x32xf32>, vector<1x32xf32>, vector<1x32xf32>, vector<1x32xf32>, vector<1x32xf32>, vector<1x32xf32>, vector<1x32xf32> -> vector<8x32xf32>
    %cst = arith.constant 0.000000e+00 : f32
    %130 = vector.broadcast %cst : f32 to vector<8x32xf32>
    %131 = tpu.concatenate %128, %130 in 1 : vector<8x64xf32>, vector<8x32xf32> -> vector<8x96xf32>
    %cst_55 = arith.constant 0.000000e+00 : f32
    %132 = vector.broadcast %cst_55 : f32 to vector<8x64xf32>
    %133 = tpu.concatenate %132, %129 in 1 : vector<8x64xf32>, vector<8x32xf32> -> vector<8x96xf32>
    %134 = tpu.concatenate %131, %133 in 0 : vector<8x96xf32>, vector<8x96xf32> -> vector<16x96xf32>
    %c0_56 = arith.constant 0 : index
    %c0_57 = arith.constant 0 : index
    %135 = vector.load %arg3[%c0_56, %c0_57] : memref<112x32xf32, #tpu.memory_space<vmem>>, vector<96x32xf32>
    %cst_58 = arith.constant dense<0.000000e+00> : vector<16x32xf32>
    %136 = tpu.matmul %134, %135, %cst_58 {dimension_numbers = #tpu.dot_dimension_numbers<[1], [0], [0], [1], [0, 0, 1, 1], [], []>} : vector<16x96xf32>, vector<96x32xf32>, vector<16x32xf32> -> vector<16x32xf32>
    %c96 = arith.constant 96 : index
    %c0_59 = arith.constant 0 : index
    %137 = vector.load %arg3[%c96, %c0_59] : memref<112x32xf32, #tpu.memory_space<vmem>>, vector<16x32xf32>
    %138 = arith.addf %136, %137 : vector<16x32xf32>
    %139 = math.tanh %138 : vector<16x32xf32>
    %140 = vector.extract_strided_slice %139 {offsets = [0, 0], sizes = [8, 32], strides = [1, 1]} : vector<16x32xf32> to vector<8x32xf32>
    %141 = vector.extract_strided_slice %139 {offsets = [8, 0], sizes = [8, 32], strides = [1, 1]} : vector<16x32xf32> to vector<8x32xf32>
    %142 = arith.addf %140, %141 : vector<8x32xf32>
    %143 = vector.shape_cast %142 : vector<8x32xf32> to vector<1x8x32xf32>
    %c0_60 = arith.constant 0 : index
    %c0_61 = arith.constant 0 : index
    %c0_62 = arith.constant 0 : index
    %144 = vector.load %arg8[%c0_60, %c0_61, %c0_62] : memref<1x8x32xf32, #tpu.memory_space<vmem>>, vector<1x8x32xf32>
    tpu.vector_store %arg8[%c0_60, %c0_61, %c0_62], %143 {strides = array<i32>} : memref<1x8x32xf32, #tpu.memory_space<vmem>>, vector<1x8x32xf32>,
    return
  }
}

</mosaic_0001>

<llo_original>
// kernel: encoder_forward.1
$region0: #{encoder_forward.1}
  #allocation0 [shape = 'u32[]', space=smem, size = 0x4, offset = 0x4, fixed_abs, tag = 'smem constant byte address 0x4 - core index']
  #allocation1 [shape = 'u32[72,128]{1,0:T(1,128)}', space=vmem, size = 0x9000, scoped, tag = 'internal scratch']
  %s0 = inlined_call_operand.vmem [shape: s32[8], index: 0, kind: input, shape index: {}]
  %s1 = inlined_call_operand.vmem [shape: s32[8], index: 1, kind: input, shape index: {}]
  %s2 = inlined_call_operand.vmem [shape: f32[24,1,48], index: 2, kind: input, shape index: {}]
  %s3 = inlined_call_operand.vmem [shape: f32[112,32], index: 3, kind: input, shape index: {}]
  %s4 = inlined_call_operand.hbm [shape: f32[8,32], index: 4, kind: output, shape index: {0}]
  %s5 = inlined_call_operand.hbm [shape: f32[8,32], index: 5, kind: output, shape index: {1}]
  %s6 = inlined_call_operand.hbm [shape: f32[8,16], index: 6, kind: output, shape index: {2}]
  %s7 = inlined_call_operand.hbm [shape: f32[8,16], index: 7, kind: output, shape index: {3}]
  %s8 = inlined_call_operand.hbm [shape: f32[1,8,32], index: 8, kind: output, shape index: {4}]
  %9 = xla_tuple %s4, %s5, %s6, %s7, %s8
  %s10 = sld [smem:[#allocation0]]
  $region66: #{encoder_forward.1} parent=0
    _
  %s12 = ssub.s32 1, %s10
  %s13 = scalar_select 0, %s12, %s10
  $region1: #{encoder_forward.1} parent=0
    #allocation2 [shape = 'u8[512]{0}', space=smem, size = 0x200, scoped, tag = 'input window, operand 0, single buffered']
    #allocation3 [shape = 's32[1]{0}', space=sflag, size = 0x4, scoped, tag = 'scoped memory for encoder_forward.1']
    #allocation4 [shape = 's32[1]{0}', space=sflag, size = 0x4, scoped, tag = 'scoped memory for encoder_forward.1']
    #allocation5 [shape = 'u8[512]{0}', space=smem, size = 0x200, scoped, tag = 'input window, operand 1, single buffered']
    #allocation6 [shape = 's32[1]{0}', space=sflag, size = 0x4, scoped, tag = 'scoped memory for encoder_forward.1']
    #allocation7 [shape = 'u8[4096]{0}', space=vmem, size = 0x1000, scoped, tag = 'output window, operand 0, single buffered']
    #allocation8 [shape = 'u8[4096]{0}', space=vmem, size = 0x1000, scoped, tag = 'output window, operand 1, single buffered']
    #allocation9 [shape = 's32[1]{0}', space=sflag, size = 0x4, scoped, tag = 'scoped memory for encoder_forward.1']
    #allocation10 [shape = 'u8[4096]{0}', space=vmem, size = 0x1000, scoped, tag = 'output window, operand 2, single buffered']
    #allocation11 [shape = 'u8[4096]{0}', space=vmem, size = 0x1000, scoped, tag = 'output window, operand 3, single buffered']
    #allocation12 [shape = 's32[1]{0}', space=sflag, size = 0x4, scoped, tag = 'scoped memory for encoder_forward.1']
    #allocation13 [shape = 'u8[4096]{0}', space=vmem, size = 0x1000, scoped, tag = 'output window, operand 4, single buffered']
    %14 = vsyncpa [#allocation4], 0
    %15 = vsyncpa [#allocation6], 0
    %16 = vsyncpa [#allocation3], 0
    %17 = vsyncpa [#allocation9], 0
    %18 = vsyncpa [#allocation12], 0
    // Predicated region
    $region2: #{encoder_forward.1} parent=1 // pred_check
      _
    $region3: #{encoder_forward.1} parent=1 // pred_check_branch
      %20 = sbr.rel (0) target = $region5
    $region4: #{encoder_forward.1} parent=1 // pred_region
      %22 = vsyncadd [#allocation4], 0
      %s24 = sshll.u32 %s0, 4
      %s25 = int_to_ptr.vmem [resolvable:$true] %s24
      %27 = dma.vmem_to_smem %s25, 16, [#allocation2], [#allocation4]
    $region5: #{encoder_forward.1} parent=1 // pred_fallthru
      _
    // Predicated region
    $region6: #{encoder_forward.1} parent=1 // pred_check
      _
    $region7: #{encoder_forward.1} parent=1 // pred_check_branch
      %29 = sbr.rel (0) target = $region9
    $region8: #{encoder_forward.1} parent=1 // pred_region
      %31 = vsyncadd [#allocation6], 0
      %s33 = sshll.u32 %s1, 4
      %s34 = int_to_ptr.vmem [resolvable:$true] %s33
      %36 = dma.vmem_to_smem %s34, 16, [#allocation5], [#allocation6]
    $region9: #{encoder_forward.1} parent=1 // pred_fallthru
      _
    // Predicated region
    $region10: #{encoder_forward.1} parent=1 // pred_check
      _
    $region11: #{encoder_forward.1} parent=1 // pred_check_branch
      %38 = sbr.rel (0) target = $region13
    $region12: #{encoder_forward.1} parent=1 // pred_region
      _
    $region13: #{encoder_forward.1} parent=1 // pred_fallthru
      _
    // Predicated region
    $region14: #{encoder_forward.1} parent=1 // pred_check
      _
    $region15: #{encoder_forward.1} parent=1 // pred_check_branch
      %40 = sbr.rel (0) target = $region17
    $region16: #{encoder_forward.1} parent=1 // pred_region
      _
    $region17: #{encoder_forward.1} parent=1 // pred_fallthru
      _
    // Predicated region
    $region18: #{encoder_forward.1} parent=1 // pred_check
      _
    $region19: #{encoder_forward.1} parent=1 // pred_check_branch
      %42 = sbr.rel (0) target = $region21
    $region20: #{encoder_forward.1} parent=1 // pred_region
      %44 = dma.done [#allocation4], 16
    $region21: #{encoder_forward.1} parent=1 // pred_fallthru
      _
    // Predicated region
    $region22: #{encoder_forward.1} parent=1 // pred_check
      _
    $region23: #{encoder_forward.1} parent=1 // pred_check_branch
      %46 = sbr.rel (0) target = $region25
    $region24: #{encoder_forward.1} parent=1 // pred_region
      %48 = dma.done [#allocation6], 16
    $region25: #{encoder_forward.1} parent=1 // pred_fallthru
      _
    %49 = sfence
    %s50 = sld [smem:[#allocation2]]
    %s51 = sld [smem:[#allocation5]]
    %s52 = scalar_lea.vmem %s2, %s50
    %v53 = vld [vmem:[%s52] sm:$0x1]
    %s54 = sadd.s32 %s51, 12
    %s55 = scalar_lea.vmem %s2, %s54
    %v56 = vld [vmem:[%s55] sm:$0x1]
    %v58 = vperm.slane %v56, 0
    %59 = vrot.lane.b32.xlu0 %v58, 32
    %v60 = vpop.permute.xlu0 %59
    %vm62 = vcmask 261120
    %v63 = vsel %vm62, %v53, %v60
    %v65 = vperm.slane %v53, 0
    %66 = vrot.lane.b32.xlu0 %v65, 96
    %v67 = vpop.permute.xlu0 %66
    %69 = vrot.lane.b32.xlu0 %v58, 112
    %v70 = vpop.permute.xlu0 %69
    %vm72 = vcmask 130048
    %v73 = vsel %vm72, %v67, %v70
    %s74 = sld [smem:[#allocation2 + $0x1]]
    %s75 = sld [smem:[#allocation5 + $0x1]]
    %s76 = scalar_lea.vmem %s2, %s74
    %v77 = vld [vmem:[%s76] sm:$0x1]
    %s78 = sadd.s32 %s75, 12
    %s79 = scalar_lea.vmem %s2, %s78
    %v80 = vld [vmem:[%s79] sm:$0x1]
    %v82 = vperm.slane %v80, 0
    %83 = vrot.lane.b32.xlu0 %v82, 32
    %v84 = vpop.permute.xlu0 %83
    %v86 = vsel %vm62, %v77, %v84
    %v88 = vperm.slane %v77, 0
    %89 = vrot.lane.b32.xlu0 %v88, 96
    %v90 = vpop.permute.xlu0 %89
    %92 = vrot.lane.b32.xlu0 %v82, 112
    %v93 = vpop.permute.xlu0 %92
    %v95 = vsel %vm72, %v90, %v93
    %s96 = sld [smem:[#allocation2 + $0x2]]
    %s97 = sld [smem:[#allocation5 + $0x2]]
    %s98 = scalar_lea.vmem %s2, %s96
    %v99 = vld [vmem:[%s98] sm:$0x1]
    %s100 = sadd.s32 %s97, 12
    %s101 = scalar_lea.vmem %s2, %s100
    %v102 = vld [vmem:[%s101] sm:$0x1]
    %v104 = vperm.slane %v102, 0
    %105 = vrot.lane.b32.xlu0 %v104, 32
    %v106 = vpop.permute.xlu0 %105
    %v108 = vsel %vm62, %v99, %v106
    %v110 = vperm.slane %v99, 0
    %111 = vrot.lane.b32.xlu0 %v110, 96
    %v112 = vpop.permute.xlu0 %111
    %114 = vrot.lane.b32.xlu0 %v104, 112
    %v115 = vpop.permute.xlu0 %114
    %v117 = vsel %vm72, %v112, %v115
    %s118 = sld [smem:[#allocation2 + $0x3]]
    %s119 = sld [smem:[#allocation5 + $0x3]]
    %s120 = scalar_lea.vmem %s2, %s118
    %v121 = vld [vmem:[%s120] sm:$0x1]
    %s122 = sadd.s32 %s119, 12
    %s123 = scalar_lea.vmem %s2, %s122
    %v124 = vld [vmem:[%s123] sm:$0x1]
    %v126 = vperm.slane %v124, 0
    %127 = vrot.lane.b32.xlu0 %v126, 32
    %v128 = vpop.permute.xlu0 %127
    %v130 = vsel %vm62, %v121, %v128
    %v132 = vperm.slane %v121, 0
    %133 = vrot.lane.b32.xlu0 %v132, 96
    %v134 = vpop.permute.xlu0 %133
    %136 = vrot.lane.b32.xlu0 %v126, 112
    %v137 = vpop.permute.xlu0 %136
    %v139 = vsel %vm72, %v134, %v137
    %s140 = sld [smem:[#allocation2 + $0x4]]
    %s141 = sld [smem:[#allocation5 + $0x4]]
    %s142 = scalar_lea.vmem %s2, %s140
    %v143 = vld [vmem:[%s142] sm:$0x1]
    %s144 = sadd.s32 %s141, 12
    %s145 = scalar_lea.vmem %s2, %s144
    %v146 = vld [vmem:[%s145] sm:$0x1]
    %v148 = vperm.slane %v146, 0
    %149 = vrot.lane.b32.xlu0 %v148, 32
    %v150 = vpop.permute.xlu0 %149
    %v152 = vsel %vm62, %v143, %v150
    %v154 = vperm.slane %v143, 0
    %155 = vrot.lane.b32.xlu0 %v154, 96
    %v156 = vpop.permute.xlu0 %155
    %158 = vrot.lane.b32.xlu0 %v148, 112
    %v159 = vpop.permute.xlu0 %158
    %v161 = vsel %vm72, %v156, %v159
    %s162 = sld [smem:[#allocation2 + $0x5]]
    %s163 = sld [smem:[#allocation5 + $0x5]]
    %s164 = scalar_lea.vmem %s2, %s162
    %v165 = vld [vmem:[%s164] sm:$0x1]
    %s166 = sadd.s32 %s163, 12
    %s167 = scalar_lea.vmem %s2, %s166
    %v168 = vld [vmem:[%s167] sm:$0x1]
    %v170 = vperm.slane %v168, 0
    %171 = vrot.lane.b32.xlu0 %v170, 32
    %v172 = vpop.permute.xlu0 %171
    %v174 = vsel %vm62, %v165, %v172
    %v176 = vperm.slane %v165, 0
    %177 = vrot.lane.b32.xlu0 %v176, 96
    %v178 = vpop.permute.xlu0 %177
    %180 = vrot.lane.b32.xlu0 %v170, 112
    %v181 = vpop.permute.xlu0 %180
    %v183 = vsel %vm72, %v178, %v181
    %s184 = sld [smem:[#allocation2 + $0x6]]
    %s185 = sld [smem:[#allocation5 + $0x6]]
    %s186 = scalar_lea.vmem %s2, %s184
    %v187 = vld [vmem:[%s186] sm:$0x1]
    %s188 = sadd.s32 %s185, 12
    %s189 = scalar_lea.vmem %s2, %s188
    %v190 = vld [vmem:[%s189] sm:$0x1]
    %v192 = vperm.slane %v190, 0
    %193 = vrot.lane.b32.xlu0 %v192, 32
    %v194 = vpop.permute.xlu0 %193
    %v196 = vsel %vm62, %v187, %v194
    %v198 = vperm.slane %v187, 0
    %199 = vrot.lane.b32.xlu0 %v198, 96
    %v200 = vpop.permute.xlu0 %199
    %202 = vrot.lane.b32.xlu0 %v192, 112
    %v203 = vpop.permute.xlu0 %202
    %v205 = vsel %vm72, %v200, %v203
    %s206 = sld [smem:[#allocation2 + $0x7]]
    %s207 = sld [smem:[#allocation5 + $0x7]]
    %s208 = scalar_lea.vmem %s2, %s206
    %v209 = vld [vmem:[%s208] sm:$0x1]
    %s210 = sadd.s32 %s207, 12
    %s211 = scalar_lea.vmem %s2, %s210
    %v212 = vld [vmem:[%s211] sm:$0x1]
    %v214 = vperm.slane %v212, 0
    %215 = vrot.lane.b32.xlu0 %v214, 32
    %v216 = vpop.permute.xlu0 %215
    %v218 = vsel %vm62, %v209, %v216
    %v220 = vperm.slane %v209, 0
    %221 = vrot.lane.b32.xlu0 %v220, 96
    %v222 = vpop.permute.xlu0 %221
    %224 = vrot.lane.b32.xlu0 %v214, 112
    %v225 = vpop.permute.xlu0 %224
    %v227 = vsel %vm72, %v222, %v225
    %vm235 = vcmask 1040384
    %v236 = vsel %vm235, %v53, %v88
    %vm237 = vcmask 1041408
    %v238 = vsel %vm237, %v236, %v110
    %vm239 = vcmask 1042432
    %v240 = vsel %vm239, %v238, %v132
    %vm241 = vcmask 1043456
    %v242 = vsel %vm241, %v240, %v154
    %vm243 = vcmask 1044480
    %v244 = vsel %vm243, %v242, %v176
    %vm245 = vcmask 1045504
    %v246 = vsel %vm245, %v244, %v198
    %vm247 = vcmask 1046528
    %v248 = vsel %vm247, %v246, %v220
    %v256 = vsel %vm235, %v56, %v82
    %v257 = vsel %vm237, %v256, %v104
    %v258 = vsel %vm239, %v257, %v126
    %v259 = vsel %vm241, %v258, %v148
    %v260 = vsel %vm243, %v259, %v170
    %v261 = vsel %vm245, %v260, %v192
    %v262 = vsel %vm247, %v261, %v214
    %263 = vst.msk [vmem:[#allocation7] sm:$0xff] %vm62, %v248
    %264 = vst.msk [vmem:[#allocation8] sm:$0xff] %vm62, %v262
    %266 = vrot.lane.b32.xlu0 %v248, 96
    %v267 = vpop.permute.xlu0 %266
    %269 = vst.msk [vmem:[#allocation10] sm:$0xff] %vm72, %v267
    %271 = vrot.lane.b32.xlu0 %v262, 96
    %v272 = vpop.permute.xlu0 %271
    %274 = vst.msk [vmem:[#allocation11] sm:$0xff] %vm72, %v272
    %v276 = vrot.slane %v86, 7
    %v279 = vrot.slane %v108, 6
    %v282 = vrot.slane %v130, 5
    %v285 = vrot.slane %v152, 4
    %v288 = vrot.slane %v174, 3
    %v291 = vrot.slane %v196, 2
    %v294 = vrot.slane %v218, 1
    %v296 = vsel %vm235, %v63, %v276
    %v297 = vsel %vm237, %v296, %v279
    %v298 = vsel %vm239, %v297, %v282
    %v299 = vsel %vm241, %v298, %v285
    %v300 = vsel %vm243, %v299, %v288
    %v301 = vsel %vm245, %v300, %v291
    %v302 = vsel %vm247, %v301, %v294
    %v304 = vrot.slane %v95, 7
    %v307 = vrot.slane %v117, 6
    %v310 = vrot.slane %v139, 5
    %v313 = vrot.slane %v161, 4
    %v316 = vrot.slane %v183, 3
    %v319 = vrot.slane %v205, 2
    %v322 = vrot.slane %v227, 1
    %v324 = vsel %vm235, %v73, %v304
    %v325 = vsel %vm237, %v324, %v307
    %v326 = vsel %vm239, %v325, %v310
    %v327 = vsel %vm241, %v326, %v313
    %v328 = vsel %vm243, %v327, %v316
    %v329 = vsel %vm245, %v328, %v319
    %v330 = vsel %vm247, %v329, %v322
    %vm331 = vcmask 523264
    %v332 = vsel %vm331, %v302, 0.0
    %334 = vrot.lane.b32.xlu0 %v330, 64
    %v335 = vpop.permute.xlu0 %334
    %v337 = vsel %vm331, 0.0, %v335
    %v338 = vld [vmem:[%s3] sm:$0xff]
    %v339 = vld [vmem:[%s3 + $0x8] sm:$0xff]
    %v340 = vld [vmem:[%s3 + $0x10] sm:$0xff]
    %v341 = vld [vmem:[%s3 + $0x18] sm:$0xff]
    %v342 = vld [vmem:[%s3 + $0x20] sm:$0xff]
    %v343 = vld [vmem:[%s3 + $0x28] sm:$0xff]
    %v344 = vld [vmem:[%s3 + $0x30] sm:$0xff]
    %v345 = vld [vmem:[%s3 + $0x38] sm:$0xff]
    %v346 = vld [vmem:[%s3 + $0x40] sm:$0xff]
    %v347 = vld [vmem:[%s3 + $0x48] sm:$0xff]
    %v348 = vld [vmem:[%s3 + $0x50] sm:$0xff]
    %v349 = vld [vmem:[%s3 + $0x58] sm:$0xff]
    %v350 = vld [vmem:[%s3 + $0x60] sm:$0xff]
    %v351 = vld [vmem:[%s3 + $0x68] sm:$0xff]
    %vm352 = vcmask 785408
    %v354 = vsel %vm352, %v332, 0
    %v357 = vsel %vm352, %v337, 0
    %359 = vmatpush.msra.mxu0 0.0
    %360 = vmatpush.msra.mxu0 0.0
    %361 = vmatpush.msra.mxu0 0.0
    %362 = vmatpush.msra.mxu0 0.0
    %363 = vmatpush.msra.mxu0 %v349
    %364 = vmatpush.msra.mxu0 %v348
    %365 = vmatpush.msra.mxu0 %v347
    %366 = vmatpush.msra.mxu0 %v346
    %367 = vmatpush.msra.mxu0 %v345
    %368 = vmatpush.msra.mxu0 %v344
    %369 = vmatpush.msra.mxu0 %v343
    %370 = vmatpush.msra.mxu0 %v342
    %371 = vmatpush.msra.mxu0 %v341
    %372 = vmatpush.msra.mxu0 %v340
    %373 = vmatpush.msra.mxu0 %v339
    %374 = vmatpush.msra.mxu0 %v338
    %375 = vmatmul.f32.gmra.mxu0 %v354
    %v376 = vpop.f32.mrf.mxu0
    %v377 = vadd.f32 %v350, %v376
    %378 = vmatmul.f32.gmra.mxu0 %v357
    %v379 = vpop.f32.mrf.mxu0
    %v380 = vadd.f32 %v351, %v379
    %381 = vdwg.mxu0
    %v382 = vtanh.pop %v377
    %v383 = vtanh.pop %v380
    %v384 = vadd.f32 %v382, %v383
    %385 = vst.msk [vmem:[#allocation13] sm:$0xff] %vm62, %v384
    // Predicated region
    $region26: #{encoder_forward.1} parent=1 // pred_check
      _
    $region27: #{encoder_forward.1} parent=1 // pred_check_branch
      %387 = sbr.rel (0) target = $region29
    $region28: #{encoder_forward.1} parent=1 // pred_region
      %389 = vsyncadd [#allocation3], 0
      %s391 = sshll.u32 [#allocation7], 4
      %s392 = int_to_ptr.vmem [resolvable:$true] %s391
      %s393 = sshll.u32 %s4, 4
      %s394 = int_to_ptr.hbm [resolvable:$true] %s393
      %396 = dma.vmem_to_hbm [thread:$0]  %s392, 128, %s394, [#allocation3]
    $region29: #{encoder_forward.1} parent=1 // pred_fallthru
      _
    // Predicated region
    $region30: #{encoder_forward.1} parent=1 // pred_check
      _
    $region31: #{encoder_forward.1} parent=1 // pred_check_branch
      %398 = sbr.rel (0) target = $region33
    $region32: #{encoder_forward.1} parent=1 // pred_region
      %400 = vsyncadd [#allocation9], 0
      %s402 = sshll.u32 [#allocation8], 4
      %s403 = int_to_ptr.vmem [resolvable:$true] %s402
      %s404 = sshll.u32 %s5, 4
      %s405 = int_to_ptr.hbm [resolvable:$true] %s404
      %407 = dma.vmem_to_hbm [thread:$0]  %s403, 128, %s405, [#allocation9]
    $region33: #{encoder_forward.1} parent=1 // pred_fallthru
      _
    // Predicated region
    $region34: #{encoder_forward.1} parent=1 // pred_check
      _
    $region35: #{encoder_forward.1} parent=1 // pred_check_branch
      %409 = sbr.rel (0) target = $region37
    $region36: #{encoder_forward.1} parent=1 // pred_region
      %411 = vsyncadd [#allocation9], 0
      %s413 = sshll.u32 [#allocation10], 4
      %s414 = int_to_ptr.vmem [resolvable:$true] %s413
      %s415 = sshll.u32 %s6, 4
      %s416 = int_to_ptr.hbm [resolvable:$true] %s415
      %418 = dma.vmem_to_hbm [thread:$0]  %s414, 128, %s416, [#allocation9]
    $region37: #{encoder_forward.1} parent=1 // pred_fallthru
      _
    // Predicated region
    $region38: #{encoder_forward.1} parent=1 // pred_check
      _
    $region39: #{encoder_forward.1} parent=1 // pred_check_branch
      %420 = sbr.rel (0) target = $region41
    $region40: #{encoder_forward.1} parent=1 // pred_region
      %422 = vsyncadd [#allocation12], 0
      %s424 = sshll.u32 [#allocation11], 4
      %s425 = int_to_ptr.vmem [resolvable:$true] %s424
      %s426 = sshll.u32 %s7, 4
      %s427 = int_to_ptr.hbm [resolvable:$true] %s426
      %429 = dma.vmem_to_hbm [thread:$0]  %s425, 128, %s427, [#allocation12]
    $region41: #{encoder_forward.1} parent=1 // pred_fallthru
      _
    // Predicated region
    $region42: #{encoder_forward.1} parent=1 // pred_check
      _
    $region43: #{encoder_forward.1} parent=1 // pred_check_branch
      %431 = sbr.rel (0) target = $region45
    $region44: #{encoder_forward.1} parent=1 // pred_region
      %433 = vsyncadd [#allocation12], 0
      %s435 = sshll.u32 [#allocation13], 4
      %s436 = int_to_ptr.vmem [resolvable:$true] %s435
      %s437 = sshll.u32 %s8, 4
      %s438 = int_to_ptr.hbm [resolvable:$true] %s437
      %440 = dma.vmem_to_hbm [thread:$0]  %s436, 128, %s438, [#allocation12]
    $region45: #{encoder_forward.1} parent=1 // pred_fallthru
      _
    // Predicated region
    $region46: #{encoder_forward.1} parent=1 // pred_check
      _
    $region47: #{encoder_forward.1} parent=1 // pred_check_branch
      %442 = sbr.rel (0) target = $region49
    $region48: #{encoder_forward.1} parent=1 // pred_region
      %444 = dma.done [#allocation3], 128
    $region49: #{encoder_forward.1} parent=1 // pred_fallthru
      _
    // Predicated region
    $region50: #{encoder_forward.1} parent=1 // pred_check
      _
    $region51: #{encoder_forward.1} parent=1 // pred_check_branch
      %446 = sbr.rel (0) target = $region53
    $region52: #{encoder_forward.1} parent=1 // pred_region
      %448 = dma.done [#allocation9], 128
    $region53: #{encoder_forward.1} parent=1 // pred_fallthru
      _
    // Predicated region
    $region54: #{encoder_forward.1} parent=1 // pred_check
      _
    $region55: #{encoder_forward.1} parent=1 // pred_check_branch
      %450 = sbr.rel (0) target = $region57
    $region56: #{encoder_forward.1} parent=1 // pred_region
      %452 = dma.done [#allocation9], 128
    $region57: #{encoder_forward.1} parent=1 // pred_fallthru
      _
    // Predicated region
    $region58: #{encoder_forward.1} parent=1 // pred_check
      _
    $region59: #{encoder_forward.1} parent=1 // pred_check_branch
      %454 = sbr.rel (0) target = $region61
    $region60: #{encoder_forward.1} parent=1 // pred_region
      %456 = dma.done [#allocation12], 128
    $region61: #{encoder_forward.1} parent=1 // pred_fallthru
      _
    // Predicated region
    $region62: #{encoder_forward.1} parent=1 // pred_check
      _
    $region63: #{encoder_forward.1} parent=1 // pred_check_branch
      %458 = sbr.rel (0) target = $region65
    $region64: #{encoder_forward.1} parent=1 // pred_region
      %460 = dma.done [#allocation12], 128
    $region65: #{encoder_forward.1} parent=1 // pred_fallthru
      _
    %461 = vsyncpa [#allocation3], 1
    %462 = vsyncpa [#allocation9], 1
    %463 = vsyncpa [#allocation12], 1
    %464 = vsyncpa [#allocation4], 1
    %465 = vsyncpa [#allocation6], 1

</llo_original>
